<compile_context>
chip_gen: v5e
topology: v5e:2x2
jax: 0.10.0
libtpu: 0.0.40
codegen_flags: <defaults>
</compile_context>

<pallas_src>
import jax
import jax.numpy as jnp
from jax import lax
from jax.experimental import pallas as pl
from jax.experimental.pallas import tpu as pltpu

BN_EPS = 1e-5
LANE = 128


def _round_up(n: int, m: int) -> int:
    return ((n + m - 1) // m) * m


# -----------------------------------------------------------------------------
# One-time parameter packing (host-side, NOT in the per-call path)
# -----------------------------------------------------------------------------
def pack_params(params, input_dim, hidden_dims, latent_dim):
    """Pad + stack all weights into a few lane-dense arrays, once at init time.

    Returns a dict with device arrays:
      w_stack : (L, P, P)       -- all hidden Linear weights, zero-padded to common P
      small   : (3L+1, Wmax)    -- rows [b_l, gamma_l, beta_l] per layer, last row = head bias
      w_head  : (P, 2*lat_p)    -- [W_mu | W_var], zero-padded
    plus static metadata (python ints).
    Zero-padding is correctness-preserving: padded W rows/cols are 0 and padded
    gamma/beta are 0, so padded feature columns stay exactly 0 through Linear/ReLU/BN.
    """
    num_hidden = len(hidden_dims)
    d_in_p = _round_up(input_dim, LANE)
    hid_p = [_round_up(h, LANE) for h in hidden_dims]
    P = max([d_in_p] + hid_p)                 # common padded width -> enables weight stacking
    lat_p = _round_up(latent_dim, LANE)
    w_small = max(P, 2 * lat_p)

    w_blocks = []
    vec_rows = []
    prev = input_dim
    for (w, b, g, be), h in zip(params["hidden"], hidden_dims):
        w_blocks.append(jnp.pad(w, ((0, P - prev), (0, P - h))))
        vec = jnp.stack([b[0], g[0], be[0]], axis=0)              # (3, h): bias, gamma, beta
        vec_rows.append(jnp.pad(vec, ((0, 0), (0, w_small - h))))
        prev = h
    w_stack = jnp.stack(w_blocks, axis=0)                          # (L, P, P)

    w_mu, b_mu = params["mu"]
    w_var, b_var = params["var"]
    w_head = jnp.concatenate(
        [jnp.pad(w_mu, ((0, P - prev), (0, lat_p - latent_dim))),
         jnp.pad(w_var, ((0, P - prev), (0, lat_p - latent_dim)))], axis=1)   # (P, 2*lat_p)
    b_head = jnp.concatenate(
        [jnp.pad(b_mu, ((0, 0), (0, lat_p - latent_dim))),
         jnp.pad(b_var, ((0, 0), (0, lat_p - latent_dim)))], axis=1)          # (1, 2*lat_p)
    b_head_row = jnp.pad(b_head, ((0, 0), (0, w_small - 2 * lat_p)))
    small = jnp.concatenate(vec_rows + [b_head_row], axis=0)       # (3L+1, w_small)

    return {
        "w_stack": w_stack,
        "small": small,
        "w_head": w_head,
        # static metadata
        "num_hidden": num_hidden,
        "P": int(P),
        "lat_p": int(lat_p),
        "d_in": int(input_dim),
        "latent_dim": int(latent_dim),
    }


# -----------------------------------------------------------------------------
# Kernel
# -----------------------------------------------------------------------------
def _make_kernel(num_hidden: int, batch: int, d_in: int, P: int, lat_p: int):
    inv_b = 1.0 / float(batch)          # Python float -> jaxpr literal, NOT a captured const
    need_pad = d_in != P

    def kernel(x_ref, w_stack_ref, small_ref, w_head_ref, out_ref, *scratch):
        # --- pad x to the common width P inside the kernel (VMEM scratch, no HBM trip) ---
        if need_pad:
            xpad_ref = scratch[0]
            xpad_ref[...] = jnp.zeros_like(xpad_ref)
            xpad_ref[:, :d_in] = x_ref[...]
            h = xpad_ref[...]
        else:
            h = x_ref[...]

        small = small_ref[...]          # (3L+1, Wmax) -- tiny, load once

        for l in range(num_hidden):
            w = w_stack_ref[l]                              # (P, P)
            b = small[3 * l    : 3 * l + 1, :P]
            gamma = small[3 * l + 1: 3 * l + 2, :P]
            beta = small[3 * l + 2: 3 * l + 3, :P]

            # Linear + ReLU
            h = jnp.dot(h, w, preferred_element_type=jnp.float32) + b
            h = jnp.maximum(h, 0.0)

            # BatchNorm1d (training mode, biased variance), two-pass for numerical safety.
            mean = jnp.sum(h, axis=0, keepdims=True) * inv_b
            c = h - mean
            var = jnp.sum(c * c, axis=0, keepdims=True) * inv_b
            scale = gamma * lax.rsqrt(var + BN_EPS)          # rsqrt -> EUP slot
            h = c * scale + beta

        # Fused mu/log_var head: one matmul, lane-dense stores into (2, B, lat_p) slab.
        b_head = small[3 * num_hidden: 3 * num_hidden + 1, :2 * lat_p]
        out = jnp.dot(h, w_head_ref[...], preferred_element_type=jnp.float32) + b_head
        out_ref[0] = out[:, :lat_p]
        out_ref[1] = out[:, lat_p:]

    return kernel


# -----------------------------------------------------------------------------
# Per-call wrapper (hot path: a single pallas_call, no packing/padding ops)
# -----------------------------------------------------------------------------
def clinical_encoder_forward(x, packed):
    """x: (B, d_in) float32.  packed: output of pack_params().
    Returns lane-padded (2, B, lat_p) slab: plane 0 = mu, plane 1 = log_var
    (real values in the first `latent_dim` lanes).  Caller slices only if needed.
    """
    batch, d_in = x.shape
    L = packed["num_hidden"]
    P = packed["P"]
    lat_p = packed["lat_p"]
    assert d_in == packed["d_in"]

    kernel = _make_kernel(L, batch, d_in, P, lat_p)
    vmem_spec = pl.BlockSpec(memory_space=pltpu.MemorySpace.VMEM)

    need_pad = d_in != P
    scratch_shapes = [pltpu.VMEM((batch, P), jnp.float32)] if need_pad else []

    # VMEM footprint (+ headroom) instead of relying on the default scoped limit.
    nbytes = 4 * (int(x.size) + int(packed["w_stack"].size)
                  + int(packed["small"].size) + int(packed["w_head"].size))
    nbytes += 4 * (2 * batch * lat_p + (batch * P if need_pad else 0))
    vmem_limit = int(min(max(int(nbytes * 1.5) + (1 << 20), 4 << 20), 100 << 20))
    # TODO(synk): if the first-layer weight footprint approaches ~48 MiB (v7x has only
    #             64 MiB VMEM), K-tile layer 0 over an "arbitrary" grid axis with an f32
    #             accumulator scratch + pl.when init/finalize instead of full-array blocks.

    # Advisory cost estimate so XLA can schedule/overlap this small custom call.
    flops = 0
    for _ in range(L):
        flops += 2 * batch * P * P + 10 * batch * P
    flops += 2 * batch * P * (2 * lat_p)
    transcendentals = L * P

    # Single grid point; all operands as full-array VMEM blocks (tiny model, launch-bound).
    # TODO(synk): for large batches on v7x, add a leading batch grid axis with
    #             dimension_semantics=("parallel",) and a two-phase BatchNorm
    #             (partial s1/s2 in VMEM_SHARED) so both TensorCores are used.
    out = pl.pallas_call(
        kernel,
        out_shape=jax.ShapeDtypeStruct((2, batch, lat_p), jnp.float32),
        in_specs=[vmem_spec, vmem_spec, vmem_spec, vmem_spec],
        out_specs=vmem_spec,
        scratch_shapes=scratch_shapes,
        compiler_params=pltpu.CompilerParams(vmem_limit_bytes=vmem_limit),
        cost_estimate=pl.CostEstimate(
            flops=flops, transcendentals=transcendentals, bytes_accessed=nbytes),
    )(x, packed["w_stack"], packed["small"], packed["w_head"])
    return out


# -----------------------------------------------------------------------------
# Synthetic init + pure-JAX reference (matches PyTorch forward, training-mode BN)
# -----------------------------------------------------------------------------
def init_params(key, input_dim, hidden_dims, latent_dim):
    params = {"hidden": []}
    prev = input_dim
    for h in hidden_dims:
        key, k1, k2, k3, k4 = jax.random.split(key, 5)
        w = jax.random.uniform(k1, (prev, h), jnp.float32, -0.1, 0.1)
        b = jax.random.uniform(k2, (1, h), jnp.float32, -0.1, 0.1)
        gamma = 1.0 + 0.05 * jax.random.uniform(k3, (1, h), jnp.float32, -1.0, 1.0)
        beta = 0.05 * jax.random.uniform(k4, (1, h), jnp.float32, -1.0, 1.0)
        params["hidden"].append((w, b, gamma, beta))
        prev = h
    key, k1, k2, k3, k4 = jax.random.split(key, 5)
    params["mu"] = (
        jax.random.uniform(k1, (prev, latent_dim), jnp.float32, -0.1, 0.1),
        jax.random.uniform(k2, (1, latent_dim), jnp.float32, -0.1, 0.1),
    )
    params["var"] = (
        jax.random.uniform(k3, (prev, latent_dim), jnp.float32, -0.1, 0.1),
        jax.random.uniform(k4, (1, latent_dim), jnp.float32, -0.1, 0.1),
    )
    return params


def reference_forward(x, params):
    h = x
    for (w, b, g, be) in params["hidden"]:
        h = jnp.maximum(h @ w + b, 0.0)
        mean = jnp.mean(h, axis=0, keepdims=True)
        var = jnp.mean((h - mean) ** 2, axis=0, keepdims=True)
        h = (h - mean) / jnp.sqrt(var + BN_EPS) * g + be
    mu = h @ params["mu"][0] + params["mu"][1]
    log_var = h @ params["var"][0] + params["var"][1]
    return mu, log_var


if __name__ == "__main__":
    batch = 8
    input_dim = 16
    hidden_dims = [32, 32]
    latent_dim = 8

    key = jax.random.PRNGKey(0)
    key, kx = jax.random.split(key)
    x = jax.random.normal(kx, (batch, input_dim), jnp.float32)

    params = init_params(key, input_dim, hidden_dims, latent_dim)
    packed = pack_params(params, input_dim, hidden_dims, latent_dim)   # one-time, off hot path

    out = clinical_encoder_forward(x, packed)   # (2, B, lat_p) lane-padded slab
    jax.block_until_ready(out)

    # Slice to the logical latent_dim only here (test / edge-of-model), not in the hot path.
    mu = out[0, :, :latent_dim]
    log_var = out[1, :, :latent_dim]

    mu_ref, lv_ref = reference_forward(x, params)
    assert mu.shape == (batch, latent_dim) and log_var.shape == (batch, latent_dim)
    assert jnp.allclose(mu, mu_ref, atol=1e-4, rtol=1e-4)
    assert jnp.allclose(log_var, lv_ref, atol=1e-4, rtol=1e-4)

    print("KERNEL_OK")
</pallas_src>

<mosaic_0001>
module attributes {stable_mosaic.version = 11 : i64} {
  func.func @kernel(%arg0: memref<8x16xf32, #tpu.memory_space<vmem>>, %arg1: memref<2x128x128xf32, #tpu.memory_space<vmem>>, %arg2: memref<7x256xf32, #tpu.memory_space<vmem>>, %arg3: memref<128x256xf32, #tpu.memory_space<vmem>>, %arg4: memref<2x8x128xf32, #tpu.memory_space<vmem>>, %arg5: memref<8x128xf32, #tpu.memory_space<vmem>>) attributes {dimension_semantics = [], scalar_prefetch = 0 : i64, scratch_operands = 1 : i64, tpu.core_type = #tpu.core_type<tc>} {
    %cst = arith.constant 0.000000e+00 : f32
    %0 = vector.broadcast %cst : f32 to vector<8x128xf32>
    %c0 = arith.constant 0 : index
    %c0_0 = arith.constant 0 : index
    %1 = vector.load %arg5[%c0, %c0_0] : memref<8x128xf32, #tpu.memory_space<vmem>>, vector<8x128xf32>
    tpu.vector_store %arg5[%c0, %c0_0], %0 {strides = array<i32>} : memref<8x128xf32, #tpu.memory_space<vmem>>, vector<8x128xf32>,
    %c0_1 = arith.constant 0 : index
    %c0_2 = arith.constant 0 : index
    %2 = vector.load %arg0[%c0_1, %c0_2] : memref<8x16xf32, #tpu.memory_space<vmem>>, vector<8x16xf32>
    %c0_3 = arith.constant 0 : index
    %c0_4 = arith.constant 0 : index
    %3 = vector.load %arg5[%c0_3, %c0_4] : memref<8x128xf32, #tpu.memory_space<vmem>>, vector<8x16xf32>
    tpu.vector_store %arg5[%c0_3, %c0_4], %2 {strides = array<i32>} : memref<8x128xf32, #tpu.memory_space<vmem>>, vector<8x16xf32>,
    %c0_5 = arith.constant 0 : index
    %c0_6 = arith.constant 0 : index
    %4 = vector.load %arg5[%c0_5, %c0_6] : memref<8x128xf32, #tpu.memory_space<vmem>>, vector<8x128xf32>
    %c0_7 = arith.constant 0 : index
    %c0_8 = arith.constant 0 : index
    %5 = vector.load %arg2[%c0_7, %c0_8] : memref<7x256xf32, #tpu.memory_space<vmem>>, vector<7x256xf32>
    %c0_9 = arith.constant 0 : index
    %c0_10 = arith.constant 0 : index
    %c0_11 = arith.constant 0 : index
    %6 = vector.load %arg1[%c0_9, %c0_10, %c0_11] : memref<2x128x128xf32, #tpu.memory_space<vmem>>, vector<1x128x128xf32>
    %7 = vector.shape_cast %6 : vector<1x128x128xf32> to vector<128x128xf32>
    %8 = vector.extract_strided_slice %5 {offsets = [0, 0], sizes = [1, 128], strides = [1, 1]} : vector<7x256xf32> to vector<1x128xf32>
    %9 = vector.extract_strided_slice %5 {offsets = [1, 0], sizes = [1, 128], strides = [1, 1]} : vector<7x256xf32> to vector<1x128xf32>
    %10 = vector.extract_strided_slice %5 {offsets = [2, 0], sizes = [1, 128], strides = [1, 1]} : vector<7x256xf32> to vector<1x128xf32>
    %cst_12 = arith.constant dense<0.000000e+00> : vector<8x128xf32>
    %11 = tpu.matmul %4, %7, %cst_12 {dimension_numbers = #tpu.dot_dimension_numbers<[1], [0], [0], [1], [0, 0, 1, 1], [], []>} : vector<8x128xf32>, vector<128x128xf32>, vector<8x128xf32> -> vector<8x128xf32>
    %12 = vector.broadcast %8 : vector<1x128xf32> to vector<8x128xf32>
    %13 = arith.addf %11, %12 : vector<8x128xf32>
    %cst_13 = arith.constant 0.000000e+00 : f32
    %14 = vector.broadcast %cst_13 : f32 to vector<8x128xf32>
    %15 = arith.maximumf %13, %14 : vector<8x128xf32>
    %cst_14 = arith.constant dense<0.000000e+00> : vector<128xf32>
    %16 = vector.multi_reduction <add>, %15, %cst_14 [0] : vector<8x128xf32> to vector<128xf32>
    %17 = vector.shape_cast %16 : vector<128xf32> to vector<1x128xf32>
    %cst_15 = arith.constant 1.250000e-01 : f32
    %18 = vector.broadcast %cst_15 : f32 to vector<1x128xf32>
    %19 = arith.mulf %17, %18 : vector<1x128xf32>
    %20 = vector.broadcast %19 : vector<1x128xf32> to vector<8x128xf32>
    %21 = arith.subf %15, %20 : vector<8x128xf32>
    %22 = arith.mulf %21, %21 : vector<8x128xf32>
    %cst_16 = arith.constant dense<0.000000e+00> : vector<128xf32>
    %23 = vector.multi_reduction <add>, %22, %cst_16 [0] : vector<8x128xf32> to vector<128xf32>
    %24 = vector.shape_cast %23 : vector<128xf32> to vector<1x128xf32>
    %cst_17 = arith.constant 1.250000e-01 : f32
    %25 = vector.broadcast %cst_17 : f32 to vector<1x128xf32>
    %26 = arith.mulf %24, %25 : vector<1x128xf32>
    %cst_18 = arith.constant 9.99999974E-6 : f32
    %27 = vector.broadcast %cst_18 : f32 to vector<1x128xf32>
    %28 = arith.addf %26, %27 : vector<1x128xf32>
    %29 = math.rsqrt %28 : vector<1x128xf32>
    %30 = arith.mulf %9, %29 : vector<1x128xf32>
    %31 = vector.broadcast %30 : vector<1x128xf32> to vector<8x128xf32>
    %32 = arith.mulf %21, %31 : vector<8x128xf32>
    %33 = vector.broadcast %10 : vector<1x128xf32> to vector<8x128xf32>
    %34 = arith.addf %32, %33 : vector<8x128xf32>
    %c1 = arith.constant 1 : index
    %c0_19 = arith.constant 0 : index
    %c0_20 = arith.constant 0 : index
    %35 = vector.load %arg1[%c1, %c0_19, %c0_20] : memref<2x128x128xf32, #tpu.memory_space<vmem>>, vector<1x128x128xf32>
    %36 = vector.shape_cast %35 : vector<1x128x128xf32> to vector<128x128xf32>
    %37 = vector.extract_strided_slice %5 {offsets = [3, 0], sizes = [1, 128], strides = [1, 1]} : vector<7x256xf32> to vector<1x128xf32>
    %38 = vector.extract_strided_slice %5 {offsets = [4, 0], sizes = [1, 128], strides = [1, 1]} : vector<7x256xf32> to vector<1x128xf32>
    %39 = vector.extract_strided_slice %5 {offsets = [5, 0], sizes = [1, 128], strides = [1, 1]} : vector<7x256xf32> to vector<1x128xf32>
    %cst_21 = arith.constant dense<0.000000e+00> : vector<8x128xf32>
    %40 = tpu.matmul %34, %36, %cst_21 {dimension_numbers = #tpu.dot_dimension_numbers<[1], [0], [0], [1], [0, 0, 1, 1], [], []>} : vector<8x128xf32>, vector<128x128xf32>, vector<8x128xf32> -> vector<8x128xf32>
    %41 = vector.broadcast %37 : vector<1x128xf32> to vector<8x128xf32>
    %42 = arith.addf %40, %41 : vector<8x128xf32>
    %cst_22 = arith.constant 0.000000e+00 : f32
    %43 = vector.broadcast %cst_22 : f32 to vector<8x128xf32>
    %44 = arith.maximumf %42, %43 : vector<8x128xf32>
    %cst_23 = arith.constant dense<0.000000e+00> : vector<128xf32>
    %45 = vector.multi_reduction <add>, %44, %cst_23 [0] : vector<8x128xf32> to vector<128xf32>
    %46 = vector.shape_cast %45 : vector<128xf32> to vector<1x128xf32>
    %cst_24 = arith.constant 1.250000e-01 : f32
    %47 = vector.broadcast %cst_24 : f32 to vector<1x128xf32>
    %48 = arith.mulf %46, %47 : vector<1x128xf32>
    %49 = vector.broadcast %48 : vector<1x128xf32> to vector<8x128xf32>
    %50 = arith.subf %44, %49 : vector<8x128xf32>
    %51 = arith.mulf %50, %50 : vector<8x128xf32>
    %cst_25 = arith.constant dense<0.000000e+00> : vector<128xf32>
    %52 = vector.multi_reduction <add>, %51, %cst_25 [0] : vector<8x128xf32> to vector<128xf32>
    %53 = vector.shape_cast %52 : vector<128xf32> to vector<1x128xf32>
    %cst_26 = arith.constant 1.250000e-01 : f32
    %54 = vector.broadcast %cst_26 : f32 to vector<1x128xf32>
    %55 = arith.mulf %53, %54 : vector<1x128xf32>
    %cst_27 = arith.constant 9.99999974E-6 : f32
    %56 = vector.broadcast %cst_27 : f32 to vector<1x128xf32>
    %57 = arith.addf %55, %56 : vector<1x128xf32>
    %58 = math.rsqrt %57 : vector<1x128xf32>
    %59 = arith.mulf %38, %58 : vector<1x128xf32>
    %60 = vector.broadcast %59 : vector<1x128xf32> to vector<8x128xf32>
    %61 = arith.mulf %50, %60 : vector<8x128xf32>
    %62 = vector.broadcast %39 : vector<1x128xf32> to vector<8x128xf32>
    %63 = arith.addf %61, %62 : vector<8x128xf32>
    %64 = vector.extract_strided_slice %5 {offsets = [6, 0], sizes = [1, 256], strides = [1, 1]} : vector<7x256xf32> to vector<1x256xf32>
    %c0_28 = arith.constant 0 : index
    %c0_29 = arith.constant 0 : index
    %65 = vector.load %arg3[%c0_28, %c0_29] : memref<128x256xf32, #tpu.memory_space<vmem>>, vector<128x256xf32>
    %cst_30 = arith.constant dense<0.000000e+00> : vector<8x256xf32>
    %66 = tpu.matmul %63, %65, %cst_30 {dimension_numbers = #tpu.dot_dimension_numbers<[1], [0], [0], [1], [0, 0, 1, 1], [], []>} : vector<8x128xf32>, vector<128x256xf32>, vector<8x256xf32> -> vector<8x256xf32>
    %67 = vector.broadcast %64 : vector<1x256xf32> to vector<8x256xf32>
    %68 = arith.addf %66, %67 : vector<8x256xf32>
    %69 = vector.extract_strided_slice %68 {offsets = [0, 0], sizes = [8, 128], strides = [1, 1]} : vector<8x256xf32> to vector<8x128xf32>
    %c0_31 = arith.constant 0 : index
    %c0_32 = arith.constant 0 : index
    %c0_33 = arith.constant 0 : index
    %70 = vector.load %arg4[%c0_31, %c0_32, %c0_33] : memref<2x8x128xf32, #tpu.memory_space<vmem>>, vector<1x8x128xf32>
    %71 = vector.shape_cast %70 : vector<1x8x128xf32> to vector<8x128xf32>
    %72 = vector.shape_cast %69 : vector<8x128xf32> to vector<1x8x128xf32>
    tpu.vector_store %arg4[%c0_31, %c0_32, %c0_33], %72 {strides = array<i32>} : memref<2x8x128xf32, #tpu.memory_space<vmem>>, vector<1x8x128xf32>,
    %73 = vector.extract_strided_slice %68 {offsets = [0, 128], sizes = [8, 128], strides = [1, 1]} : vector<8x256xf32> to vector<8x128xf32>
    %c1_34 = arith.constant 1 : index
    %c0_35 = arith.constant 0 : index
    %c0_36 = arith.constant 0 : index
    %74 = vector.load %arg4[%c1_34, %c0_35, %c0_36] : memref<2x8x128xf32, #tpu.memory_space<vmem>>, vector<1x8x128xf32>
    %75 = vector.shape_cast %74 : vector<1x8x128xf32> to vector<8x128xf32>
    %76 = vector.shape_cast %73 : vector<8x128xf32> to vector<1x8x128xf32>
    tpu.vector_store %arg4[%c1_34, %c0_35, %c0_36], %76 {strides = array<i32>} : memref<2x8x128xf32, #tpu.memory_space<vmem>>, vector<1x8x128xf32>,
    return
  }
}

</mosaic_0001>

<llo_original>
// kernel: tpu_custom_call.1
$region0: #{tpu_custom_call.1}
  #allocation0 [shape = 'u32[]', space=smem, size = 0x4, offset = 0x4, fixed_abs, tag = 'smem constant byte address 0x4 - core index']
  #allocation1 [shape = 'u32[72,128]{1,0:T(1,128)}', space=vmem, size = 0x9000, scoped, tag = 'internal scratch']
  #allocation2 [shape = 'f32[8,128]{1,0:T(8,128)}', space=vmem, size = 0x1000, scoped, tag = 'scratch operand']
  %s0 = inlined_call_operand.hbm [shape: f32[8,16], index: 0, kind: input, shape index: {}]
  %s1 = inlined_call_operand.hbm [shape: f32[2,128,128], index: 1, kind: input, shape index: {}]
  %s2 = inlined_call_operand.hbm [shape: f32[7,256], index: 2, kind: input, shape index: {}]
  %s3 = inlined_call_operand.hbm [shape: f32[128,256], index: 3, kind: input, shape index: {}]
  %s4 = inlined_call_operand.hbm [shape: f32[2,8,128], index: 4, kind: output, shape index: {}]
  %s5 = sld [smem:[#allocation0]]
  $region42: #{tpu_custom_call.1} parent=0
    _
  %s7 = ssub.s32 1, %s5
  %s8 = scalar_select 0, %s7, %s5
  $region1: #{tpu_custom_call.1} parent=0
    #allocation3 [shape = 'u8[4096]{0}', space=vmem, size = 0x1000, scoped, tag = 'input window, operand 0, single buffered']
    #allocation4 [shape = 's32[1]{0}', space=sflag, size = 0x4, scoped, tag = 'scoped memory for tpu_custom_call.1']
    #allocation5 [shape = 's32[1]{0}', space=sflag, size = 0x4, scoped, tag = 'scoped memory for tpu_custom_call.1']
    #allocation6 [shape = 'u8[131072]{0}', space=vmem, size = 0x20000, scoped, tag = 'input window, operand 1, single buffered']
    #allocation7 [shape = 's32[1]{0}', space=sflag, size = 0x4, scoped, tag = 'scoped memory for tpu_custom_call.1']
    #allocation8 [shape = 'u8[8192]{0}', space=vmem, size = 0x2000, scoped, tag = 'input window, operand 2, single buffered']
    #allocation9 [shape = 'u8[131072]{0}', space=vmem, size = 0x20000, scoped, tag = 'input window, operand 3, single buffered']
    #allocation10 [shape = 's32[1]{0}', space=sflag, size = 0x4, scoped, tag = 'scoped memory for tpu_custom_call.1']
    #allocation11 [shape = 'u8[8192]{0}', space=vmem, size = 0x2000, scoped, tag = 'output window, operand 0, single buffered']
    %9 = vsyncpa [#allocation4], 0
    %10 = vsyncpa [#allocation7], 0
    %11 = vsyncpa [#allocation10], 0
    %12 = vsyncpa [#allocation5], 0
    // Predicated region
    $region2: #{tpu_custom_call.1} parent=1 // pred_check
      _
    $region3: #{tpu_custom_call.1} parent=1 // pred_check_branch
      %14 = sbr.rel (0) target = $region5
    $region4: #{tpu_custom_call.1} parent=1 // pred_region
      %16 = vsyncadd [#allocation4], 0
      %s18 = sshll.u32 %s0, 4
      %s19 = int_to_ptr.hbm [resolvable:$true] %s18
      %s20 = sshll.u32 [#allocation3], 4
      %s21 = int_to_ptr.vmem [resolvable:$true] %s20
      %23 = dma.hbm_to_vmem [thread:$0]  %s19, 128, %s21, [#allocation4]
    $region5: #{tpu_custom_call.1} parent=1 // pred_fallthru
      _
    // Predicated region
    $region6: #{tpu_custom_call.1} parent=1 // pred_check
      _
    $region7: #{tpu_custom_call.1} parent=1 // pred_check_branch
      %25 = sbr.rel (0) target = $region9
    $region8: #{tpu_custom_call.1} parent=1 // pred_region
      %27 = vsyncadd [#allocation7], 0
      %s28 = sshll.u32 %s1, 4
      %s29 = int_to_ptr.hbm [resolvable:$true] %s28
      %s30 = sshll.u32 [#allocation6], 4
      %s31 = int_to_ptr.vmem [resolvable:$true] %s30
      %36 = dma.hbm_to_vmem [thread:$0]  %s29, 4096, %s31, [#allocation7], 128, 128, 8
    $region9: #{tpu_custom_call.1} parent=1 // pred_fallthru
      _
    // Predicated region
    $region10: #{tpu_custom_call.1} parent=1 // pred_check
      _
    $region11: #{tpu_custom_call.1} parent=1 // pred_check_branch
      %38 = sbr.rel (0) target = $region13
    $region12: #{tpu_custom_call.1} parent=1 // pred_region
      %40 = vsyncadd [#allocation7], 0
      %s42 = sshll.u32 %s2, 4
      %s43 = int_to_ptr.hbm [resolvable:$true] %s42
      %s44 = sshll.u32 [#allocation8], 4
      %s45 = int_to_ptr.vmem [resolvable:$true] %s44
      %47 = dma.hbm_to_vmem [thread:$0]  %s43, 256, %s45, [#allocation7]
    $region13: #{tpu_custom_call.1} parent=1 // pred_fallthru
      _
    // Predicated region
    $region14: #{tpu_custom_call.1} parent=1 // pred_check
      _
    $region15: #{tpu_custom_call.1} parent=1 // pred_check_branch
      %49 = sbr.rel (0) target = $region17
    $region16: #{tpu_custom_call.1} parent=1 // pred_region
      %51 = vsyncadd [#allocation10], 0
      %s52 = sshll.u32 %s3, 4
      %s53 = int_to_ptr.hbm [resolvable:$true] %s52
      %s54 = sshll.u32 [#allocation9], 4
      %s55 = int_to_ptr.vmem [resolvable:$true] %s54
      %60 = dma.hbm_to_vmem [thread:$0]  %s53, 4096, %s55, [#allocation10], 256, 256, 16
    $region17: #{tpu_custom_call.1} parent=1 // pred_fallthru
      _
    // Predicated region
    $region18: #{tpu_custom_call.1} parent=1 // pred_check
      _
    $region19: #{tpu_custom_call.1} parent=1 // pred_check_branch
      %62 = sbr.rel (0) target = $region21
    $region20: #{tpu_custom_call.1} parent=1 // pred_region
      %64 = dma.done [#allocation4], 128
    $region21: #{tpu_custom_call.1} parent=1 // pred_fallthru
      _
    // Predicated region
    $region22: #{tpu_custom_call.1} parent=1 // pred_check
      _
    $region23: #{tpu_custom_call.1} parent=1 // pred_check_branch
      %66 = sbr.rel (0) target = $region25
    $region24: #{tpu_custom_call.1} parent=1 // pred_region
      %68 = dma.done [#allocation7], 4096
    $region25: #{tpu_custom_call.1} parent=1 // pred_fallthru
      _
    // Predicated region
    $region26: #{tpu_custom_call.1} parent=1 // pred_check
      _
    $region27: #{tpu_custom_call.1} parent=1 // pred_check_branch
      %70 = sbr.rel (0) target = $region29
    $region28: #{tpu_custom_call.1} parent=1 // pred_region
      %72 = dma.done [#allocation7], 256
    $region29: #{tpu_custom_call.1} parent=1 // pred_fallthru
      _
    // Predicated region
    $region30: #{tpu_custom_call.1} parent=1 // pred_check
      _
    $region31: #{tpu_custom_call.1} parent=1 // pred_check_branch
      %74 = sbr.rel (0) target = $region33
    $region32: #{tpu_custom_call.1} parent=1 // pred_region
      %76 = dma.done [#allocation10], 4096
    $region33: #{tpu_custom_call.1} parent=1 // pred_fallthru
      _
    %77 = vst [vmem:[#allocation2] sm:$0xff] 0.0
    %v78 = vld [vmem:[#allocation3] sm:$0xff]
    %vm79 = vcmask 130048
    %80 = vst.msk [vmem:[#allocation2] sm:$0xff] %vm79, %v78
    %v81 = vld [vmem:[#allocation2] sm:$0xff]
    %v82 = vld [vmem:[#allocation8] sm:$0x7f]
    %v83 = vld [vmem:[#allocation8 + $0x8] sm:$0x7f]
    %v84 = vld [vmem:[#allocation6] sm:$0xff]
    %v85 = vld [vmem:[#allocation6 + $0x8] sm:$0xff]
    %v86 = vld [vmem:[#allocation6 + $0x10] sm:$0xff]
    %v87 = vld [vmem:[#allocation6 + $0x18] sm:$0xff]
    %v88 = vld [vmem:[#allocation6 + $0x20] sm:$0xff]
    %v89 = vld [vmem:[#allocation6 + $0x28] sm:$0xff]
    %v90 = vld [vmem:[#allocation6 + $0x30] sm:$0xff]
    %v91 = vld [vmem:[#allocation6 + $0x38] sm:$0xff]
    %v92 = vld [vmem:[#allocation6 + $0x40] sm:$0xff]
    %v93 = vld [vmem:[#allocation6 + $0x48] sm:$0xff]
    %v94 = vld [vmem:[#allocation6 + $0x50] sm:$0xff]
    %v95 = vld [vmem:[#allocation6 + $0x58] sm:$0xff]
    %v96 = vld [vmem:[#allocation6 + $0x60] sm:$0xff]
    %v97 = vld [vmem:[#allocation6 + $0x68] sm:$0xff]
    %v98 = vld [vmem:[#allocation6 + $0x70] sm:$0xff]
    %v99 = vld [vmem:[#allocation6 + $0x78] sm:$0xff]
    %v100 = vperm.slane %v82, 0
    %101 = vmatpush.msra.mxu0 %v99
    %102 = vmatpush.msra.mxu0 %v98
    %103 = vmatpush.msra.mxu0 %v97
    %104 = vmatpush.msra.mxu0 %v96
    %105 = vmatpush.msra.mxu0 %v95
    %106 = vmatpush.msra.mxu0 %v94
    %107 = vmatpush.msra.mxu0 %v93
    %108 = vmatpush.msra.mxu0 %v92
    %109 = vmatpush.msra.mxu0 %v91
    %110 = vmatpush.msra.mxu0 %v90
    %111 = vmatpush.msra.mxu0 %v89
    %112 = vmatpush.msra.mxu0 %v88
    %113 = vmatpush.msra.mxu0 %v87
    %114 = vmatpush.msra.mxu0 %v86
    %115 = vmatpush.msra.mxu0 %v85
    %116 = vmatpush.msra.mxu0 %v84
    %117 = vmatmul.f32.gmra.mxu0 %v81
    %v118 = vpop.f32.mrf.mxu0
    %v119 = vadd.f32 %v100, %v118
    %120 = vdwg.mxu0
    %v121 = vmax.f32 %v119, 0.0
    %v122 = vrot.slane %v121, 4
    %v123 = vadd.f32 %v121, %v122
    %v124 = vrot.slane %v123, 2
    %v125 = vadd.f32 %v123, %v124
    %v126 = vrot.slane %v125, 1
    %v127 = vadd.f32 %v125, %v126
    %v128 = vmul.f32 %v127, 0.125
    %v129 = vsub.f32 %v121, %v128
    %v130 = vmul.f32 %v129, %v129
    %v131 = vrot.slane %v130, 4
    %v132 = vadd.f32 %v130, %v131
    %v133 = vrot.slane %v132, 2
    %v134 = vadd.f32 %v132, %v133
    %v135 = vrot.slane %v134, 1
    %v136 = vadd.f32 %v134, %v135
    %v137 = vmul.f32 %v136, 0.125
    %v138 = vadd.f32 %v137, 1e-05
    %v139 = vrsqrt.pop %v138
    %v140 = vmul.f32 %v139, %v138
    %v141 = vmul.f32 %v140, %v139
    %v142 = vmul.f32 0.5, %v141
    %v143 = vsub.f32 1.5, %v142
    %v144 = vmul.f32 %v139, %v143
    %vm145 = vweird.f32 %v138
    %vm146 = vweird.f32 %v139
    %vm147 = vmor %vm145, %vm146
    %v148 = vsel %vm147, %v139, %v144
    %v149 = vmul.f32 %v82, %v148
    %v150 = vperm.slane %v149, 1
    %v151 = vmul.f32 %v129, %v150
    %v152 = vperm.slane %v82, 2
    %v153 = vadd.f32 %v151, %v152
    %s154 = scalar_lea.vmem [#allocation6], 128
    %v155 = vld [vmem:[%s154] sm:$0xff]
    %v156 = vld [vmem:[%s154 + $0x8] sm:$0xff]
    %v157 = vld [vmem:[%s154 + $0x10] sm:$0xff]
    %v158 = vld [vmem:[%s154 + $0x18] sm:$0xff]
    %v159 = vld [vmem:[%s154 + $0x20] sm:$0xff]
    %v160 = vld [vmem:[%s154 + $0x28] sm:$0xff]
    %v161 = vld [vmem:[%s154 + $0x30] sm:$0xff]
    %v162 = vld [vmem:[%s154 + $0x38] sm:$0xff]
    %v163 = vld [vmem:[%s154 + $0x40] sm:$0xff]
    %v164 = vld [vmem:[%s154 + $0x48] sm:$0xff]
    %v165 = vld [vmem:[%s154 + $0x50] sm:$0xff]
    %v166 = vld [vmem:[%s154 + $0x58] sm:$0xff]
    %v167 = vld [vmem:[%s154 + $0x60] sm:$0xff]
    %v168 = vld [vmem:[%s154 + $0x68] sm:$0xff]
    %v169 = vld [vmem:[%s154 + $0x70] sm:$0xff]
    %v170 = vld [vmem:[%s154 + $0x78] sm:$0xff]
    %v171 = vperm.slane %v82, 3
    %172 = vmatpush.msra.mxu0 %v170
    %173 = vmatpush.msra.mxu0 %v169
    %174 = vmatpush.msra.mxu0 %v168
    %175 = vmatpush.msra.mxu0 %v167
    %176 = vmatpush.msra.mxu0 %v166
    %177 = vmatpush.msra.mxu0 %v165
    %178 = vmatpush.msra.mxu0 %v164
    %179 = vmatpush.msra.mxu0 %v163
    %180 = vmatpush.msra.mxu0 %v162
    %181 = vmatpush.msra.mxu0 %v161
    %182 = vmatpush.msra.mxu0 %v160
    %183 = vmatpush.msra.mxu0 %v159
    %184 = vmatpush.msra.mxu0 %v158
    %185 = vmatpush.msra.mxu0 %v157
    %186 = vmatpush.msra.mxu0 %v156
    %187 = vmatpush.msra.mxu0 %v155
    %188 = vmatmul.f32.gmra.mxu0 %v153
    %v189 = vpop.f32.mrf.mxu0
    %v190 = vadd.f32 %v171, %v189
    %191 = vdwg.mxu0
    %v192 = vmax.f32 %v190, 0.0
    %v193 = vrot.slane %v192, 4
    %v194 = vadd.f32 %v192, %v193
    %v195 = vrot.slane %v194, 2
    %v196 = vadd.f32 %v194, %v195
    %v197 = vrot.slane %v196, 1
    %v198 = vadd.f32 %v196, %v197
    %v199 = vmul.f32 %v198, 0.125
    %v200 = vsub.f32 %v192, %v199
    %v201 = vmul.f32 %v200, %v200
    %v202 = vrot.slane %v201, 4
    %v203 = vadd.f32 %v201, %v202
    %v204 = vrot.slane %v203, 2
    %v205 = vadd.f32 %v203, %v204
    %v206 = vrot.slane %v205, 1
    %v207 = vadd.f32 %v205, %v206
    %v208 = vmul.f32 %v207, 0.125
    %v209 = vadd.f32 %v208, 1e-05
    %v210 = vrsqrt.pop %v209
    %v211 = vmul.f32 %v210, %v209
    %v212 = vmul.f32 %v211, %v210
    %v213 = vmul.f32 0.5, %v212
    %v214 = vsub.f32 1.5, %v213
    %v215 = vmul.f32 %v210, %v214
    %vm216 = vweird.f32 %v209
    %vm217 = vweird.f32 %v210
    %vm218 = vmor %vm216, %vm217
    %v219 = vsel %vm218, %v210, %v215
    %v220 = vmul.f32 %v82, %v219
    %v221 = vperm.slane %v220, 4
    %v222 = vmul.f32 %v200, %v221
    %v223 = vperm.slane %v82, 5
    %v224 = vadd.f32 %v222, %v223
    %v225 = vld [vmem:[#allocation9] sm:$0xff]
    %v226 = vld [vmem:[#allocation9 + $0x8] sm:$0xff]
    %v227 = vld [vmem:[#allocation9 + $0x10] sm:$0xff]
    %v228 = vld [vmem:[#allocation9 + $0x18] sm:$0xff]
    %v229 = vld [vmem:[#allocation9 + $0x20] sm:$0xff]
    %v230 = vld [vmem:[#allocation9 + $0x28] sm:$0xff]
    %v231 = vld [vmem:[#allocation9 + $0x30] sm:$0xff]
    %v232 = vld [vmem:[#allocation9 + $0x38] sm:$0xff]
    %v233 = vld [vmem:[#allocation9 + $0x40] sm:$0xff]
    %v234 = vld [vmem:[#allocation9 + $0x48] sm:$0xff]
    %v235 = vld [vmem:[#allocation9 + $0x50] sm:$0xff]
    %v236 = vld [vmem:[#allocation9 + $0x58] sm:$0xff]
    %v237 = vld [vmem:[#allocation9 + $0x60] sm:$0xff]
    %v238 = vld [vmem:[#allocation9 + $0x68] sm:$0xff]
    %v239 = vld [vmem:[#allocation9 + $0x70] sm:$0xff]
    %v240 = vld [vmem:[#allocation9 + $0x78] sm:$0xff]
    %v241 = vld [vmem:[#allocation9 + $0x80] sm:$0xff]
    %v242 = vld [vmem:[#allocation9 + $0x88] sm:$0xff]
    %v243 = vld [vmem:[#allocation9 + $0x90] sm:$0xff]
    %v244 = vld [vmem:[#allocation9 + $0x98] sm:$0xff]
    %v245 = vld [vmem:[#allocation9 + $0xa0] sm:$0xff]
    %v246 = vld [vmem:[#allocation9 + $0xa8] sm:$0xff]
    %v247 = vld [vmem:[#allocation9 + $0xb0] sm:$0xff]
    %v248 = vld [vmem:[#allocation9 + $0xb8] sm:$0xff]
    %v249 = vld [vmem:[#allocation9 + $0xc0] sm:$0xff]
    %v250 = vld [vmem:[#allocation9 + $0xc8] sm:$0xff]
    %v251 = vld [vmem:[#allocation9 + $0xd0] sm:$0xff]
    %v252 = vld [vmem:[#allocation9 + $0xd8] sm:$0xff]
    %v253 = vld [vmem:[#allocation9 + $0xe0] sm:$0xff]
    %v254 = vld [vmem:[#allocation9 + $0xe8] sm:$0xff]
    %v255 = vld [vmem:[#allocation9 + $0xf0] sm:$0xff]
    %v256 = vld [vmem:[#allocation9 + $0xf8] sm:$0xff]
    %v257 = vperm.slane %v82, 6
    %v258 = vperm.slane %v83, 6
    %259 = vmatpush.msra.mxu0 %v255
    %260 = vmatpush.msra.mxu0 %v253
    %261 = vmatpush.msra.mxu0 %v251
    %262 = vmatpush.msra.mxu0 %v249
    %263 = vmatpush.msra.mxu0 %v247
    %264 = vmatpush.msra.mxu0 %v245
    %265 = vmatpush.msra.mxu0 %v243
    %266 = vmatpush.msra.mxu0 %v241
    %267 = vmatpush.msra.mxu0 %v239
    %268 = vmatpush.msra.mxu0 %v237
    %269 = vmatpush.msra.mxu0 %v235
    %270 = vmatpush.msra.mxu0 %v233
    %271 = vmatpush.msra.mxu0 %v231
    %272 = vmatpush.msra.mxu0 %v229
    %273 = vmatpush.msra.mxu0 %v227
    %274 = vmatpush.msra.mxu0 %v225
    %275 = vmatmul.f32.gmra.mxu0 %v224
    %v276 = vpop.f32.mrf.mxu0
    %v277 = vadd.f32 %v257, %v276
    %278 = vdwg.mxu0
    %279 = vmatpush.msra.mxu0 %v256
    %280 = vmatpush.msra.mxu0 %v254
    %281 = vmatpush.msra.mxu0 %v252
    %282 = vmatpush.msra.mxu0 %v250
    %283 = vmatpush.msra.mxu0 %v248
    %284 = vmatpush.msra.mxu0 %v246
    %285 = vmatpush.msra.mxu0 %v244
    %286 = vmatpush.msra.mxu0 %v242
    %287 = vmatpush.msra.mxu0 %v240
    %288 = vmatpush.msra.mxu0 %v238
    %289 = vmatpush.msra.mxu0 %v236
    %290 = vmatpush.msra.mxu0 %v234
    %291 = vmatpush.msra.mxu0 %v232
    %292 = vmatpush.msra.mxu0 %v230
    %293 = vmatpush.msra.mxu0 %v228
    %294 = vmatpush.msra.mxu0 %v226
    %295 = vmatmul.f32.gmra.mxu0 %v224
    %v296 = vpop.f32.mrf.mxu0
    %v297 = vadd.f32 %v258, %v296
    %298 = vdwg.mxu0
    %299 = vst [vmem:[#allocation11] sm:$0xff] %v277
    %s300 = scalar_lea.vmem [#allocation11], 8
    %301 = vst [vmem:[%s300] sm:$0xff] %v297
    // Predicated region
    $region34: #{tpu_custom_call.1} parent=1 // pred_check
      _
    $region35: #{tpu_custom_call.1} parent=1 // pred_check_branch
      %303 = sbr.rel (0) target = $region37
    $region36: #{tpu_custom_call.1} parent=1 // pred_region
      %305 = vsyncadd [#allocation5], 0
      %s306 = sshll.u32 [#allocation11], 4
      %s307 = int_to_ptr.vmem [resolvable:$true] %s306
      %s308 = sshll.u32 %s4, 4
      %s309 = int_to_ptr.hbm [resolvable:$true] %s308
      %314 = dma.vmem_to_hbm [thread:$0]  %s307, 256, %s309, [#allocation5], 128, 128, 8
    $region37: #{tpu_custom_call.1} parent=1 // pred_fallthru
      _
    // Predicated region
    $region38: #{tpu_custom_call.1} parent=1 // pred_check
      _
    $region39: #{tpu_custom_call.1} parent=1 // pred_check_branch
      %316 = sbr.rel (0) target = $region41
    $region40: #{tpu_custom_call.1} parent=1 // pred_region
      %318 = dma.done [#allocation5], 256
    $region41: #{tpu_custom_call.1} parent=1 // pred_fallthru
      _
    %319 = vsyncpa [#allocation4], 1
    %320 = vsyncpa [#allocation7], 1
    %321 = vsyncpa [#allocation10], 1
    %322 = vsyncpa [#allocation5], 1

</llo_original>
